<compile_context>
chip_gen: v5e
topology: v5e:2x2
jax: 0.10.0
libtpu: 0.0.40
codegen_flags: <defaults>
</compile_context>

<pallas_src>
import jax
import jax.numpy as jnp
from jax import lax
from jax.experimental import pallas as pl
from jax.experimental.pallas import tpu as pltpu


def _num_tensorcores() -> int:
    """Best-effort TensorCores-per-chip (2 on v7x, 1 on v5e/v6e); default 1."""
    try:
        info = pltpu.get_tpu_info()
    except Exception:
        return 1
    for name in ("num_cores", "num_tensorcores", "tensorcores_per_chip",
                 "cores_per_chip"):
        v = getattr(info, name, None)
        if isinstance(v, int) and v >= 1:
            return int(v)
    return 1


def _make_tv_kernel(*, h, w, hw, block_rows, nc, num_blocks, steps_per_part,
                    has_dead_steps, ragged):
    """Kernel closure with all static shape/schedule info baked in."""

    def tv_kernel(mh_ref, mw_ref, x_ref, o_ref):
        part = pl.program_id(0)
        step = pl.program_id(1)

        @pl.when(step == 0)
        def _init():
            o_ref[...] = jnp.zeros_like(o_ref)

        gb = part * steps_per_part + step  # global row-block index

        def block_sum(xv):
            # xv: (block_rows, hw) f32. Rolls run on the XLU; the precomputed
            # masks (scales folded in) zero wrap/seam columns.
            e = None
            if h > 1:
                dh = pltpu.roll(xv, hw - w, axis=1) - xv   # == roll by -w
                e = dh * dh * mh_ref[...]
            if w > 1:
                dw = pltpu.roll(xv, hw - 1, axis=1) - xv   # == roll by -1
                t = dw * dw * mw_ref[...]
                e = t if e is None else e + t
            if e is None:                                  # h == w == 1
                return jnp.float32(0.0)
            return jnp.sum(e)

        def accumulate():
            x = x_ref[...].astype(jnp.float32)
            if ragged:
                is_last = gb == num_blocks - 1

                @pl.when(jnp.logical_not(is_last))
                def _full():
                    o_ref[...] += block_sum(x)

                @pl.when(is_last)
                def _partial():
                    # Only the final ragged block pays for row masking.
                    row = lax.broadcasted_iota(jnp.int32, (block_rows, 1), 0)
                    valid = (gb * block_rows + row) < nc
                    o_ref[...] += block_sum(jnp.where(valid, x, 0.0))
            else:
                o_ref[...] += block_sum(x)

        if has_dead_steps:
            @pl.when(gb < num_blocks)
            def _guarded():
                accumulate()
        else:
            accumulate()

    return tv_kernel


def tv_loss(x: jax.Array, tv_loss_weight: float = 1.0) -> jax.Array:
    """Pallas implementation of TVLoss.forward. x: (N, C, H, W)."""
    n, c, h, w = x.shape
    nc = n * c
    hw = h * w

    count_h = c * (h - 1) * w
    count_w = c * h * (w - 1)
    # PyTorch divides by zero when h == 1 or w == 1 (inf/nan); we drop the
    # degenerate term instead of producing NaN/inf.
    h_scale = float(tv_loss_weight) / (count_h * n) if count_h > 0 else 0.0
    w_scale = float(tv_loss_weight) / (count_w * n) if count_w > 0 else 0.0

    # Lane-dense, zero-copy view: one flattened image slice per row.
    x2d = x.reshape(nc, hw)

    # Loop-invariant masks with the normalization scales folded in.
    col = jnp.arange(hw, dtype=jnp.int32)
    mask_h = jnp.where(col < hw - w, jnp.float32(h_scale),
                       jnp.float32(0.0)).reshape(1, hw)
    mask_w = jnp.where((col % w) != (w - 1), jnp.float32(w_scale),
                       jnp.float32(0.0)).reshape(1, hw)

    # Rows (image slices) per block: ~8 MiB of input per block (amortizes the
    # ~0.35 us per-grid-step overhead; double-buffered input + temporaries
    # stay under the 48 MiB scoped VMEM limit set below).
    itemsize = jnp.dtype(x.dtype).itemsize
    row_bytes = hw * itemsize
    cap_bytes = 8 * 1024 * 1024
    rows_fit = max(8, cap_bytes // max(row_bytes, 1))
    if rows_fit >= nc:
        block_rows = nc                          # full first dim: always legal
    else:
        block_rows = max(8, (rows_fit // 8) * 8)  # sublane-aligned

    num_blocks = -(-nc // block_rows)
    ragged = (nc % block_rows) != 0

    # One partial per TensorCore; only split on 2-TC chips (v7x megacore).
    num_tc = _num_tensorcores()
    num_parts = 2 if (num_tc >= 2 and num_blocks >= 2) else 1
    steps_per_part = -(-num_blocks // num_parts)
    has_dead_steps = num_parts * steps_per_part > num_blocks

    kernel = _make_tv_kernel(
        h=h, w=w, hw=hw, block_rows=block_rows, nc=nc, num_blocks=num_blocks,
        steps_per_part=steps_per_part, has_dead_steps=has_dead_steps,
        ragged=ragged)

    if has_dead_steps:
        def x_index_map(part, step):
            # Clamp so the dead trailing step never DMAs out of bounds; the
            # kernel skips accumulation for those steps.
            return (jnp.minimum(part * steps_per_part + step, num_blocks - 1), 0)
    else:
        def x_index_map(part, step):
            return (part * steps_per_part + step, 0)

    partials = pl.pallas_call(
        kernel,
        out_shape=jax.ShapeDtypeStruct((num_parts, 1), jnp.float32),
        grid_spec=pltpu.PrefetchScalarGridSpec(
            num_scalar_prefetch=0,
            grid=(num_parts, steps_per_part),
            in_specs=[
                pl.BlockSpec((1, hw), lambda part, step: (0, 0)),   # mask_h
                pl.BlockSpec((1, hw), lambda part, step: (0, 0)),   # mask_w
                pl.BlockSpec((block_rows, hw), x_index_map),        # x
            ],
            out_specs=pl.BlockSpec((1, 1), lambda part, step: (part, 0)),
        ),
        compiler_params=pltpu.CompilerParams(
            dimension_semantics=("parallel", "arbitrary"),
            vmem_limit_bytes=48 * 1024 * 1024,
        ),
    )(mask_h, mask_w, x2d)

    return jnp.sum(partials)


def tv_loss_ref(x: jax.Array, tv_loss_weight: float = 1.0) -> jax.Array:
    """Pure-JAX reference replicating the PyTorch module exactly."""
    n, c, h, w = x.shape
    count_h = c * (h - 1) * w
    count_w = c * h * (w - 1)
    h_tv = jnp.sum((x[:, :, 1:, :] - x[:, :, : h - 1, :]) ** 2)
    w_tv = jnp.sum((x[:, :, :, 1:] - x[:, :, :, : w - 1]) ** 2)
    return tv_loss_weight * (h_tv / count_h + w_tv / count_w) / n


if __name__ == "__main__":
    key = jax.random.PRNGKey(0)
    x = jax.random.normal(key, (2, 4, 16, 16), dtype=jnp.float32)

    out = tv_loss(x, tv_loss_weight=1.0)
    out = jax.block_until_ready(out)

    ref = tv_loss_ref(x, tv_loss_weight=1.0)
    assert jnp.allclose(out, ref, rtol=1e-5, atol=1e-5), (out, ref)

    print("KERNEL_OK")
</pallas_src>

<mosaic_0001>
module attributes {stable_mosaic.version = 11 : i64} {
  func.func @tv_kernel(%arg0: i32, %arg1: i32, %arg2: memref<1x256xf32, #tpu.memory_space<vmem>>, %arg3: memref<1x256xf32, #tpu.memory_space<vmem>>, %arg4: memref<8x256xf32, #tpu.memory_space<vmem>>, %arg5: memref<1x1xf32, #tpu.memory_space<vmem>>) attributes {dimension_semantics = [#tpu.dimension_semantics<parallel>, #tpu.dimension_semantics<arbitrary>], iteration_bounds = array<i64: 1, 1>, scalar_prefetch = 0 : i64, scratch_operands = 0 : i64, tpu.core_type = #tpu.core_type<tc>, window_params = [{pipeline_mode = #tpu.pipeline_mode<synchronous>, transform_indices = @transform_0, window_bounds = array<i64: 1, 256>}, {pipeline_mode = #tpu.pipeline_mode<synchronous>, transform_indices = @transform_1, window_bounds = array<i64: 1, 256>}, {transform_indices = @transform_2, window_bounds = array<i64: 8, 256>}, {transform_indices = @transform_3, window_bounds = array<i64: 1, 1>}]} {
    %c0_i32 = arith.constant 0 : i32
    %0 = arith.cmpi eq, %arg1, %c0_i32 : i32
    %1 = arith.extui %0 : i1 to i32
    %c0_i32_0 = arith.constant 0 : i32
    %2 = arith.cmpi ne, %1, %c0_i32_0 : i32
    scf.if %2 {
      %cst_10 = arith.constant 0.000000e+00 : f32
      %25 = vector.broadcast %cst_10 : f32 to vector<1x1xf32>
      %c0_11 = arith.constant 0 : index
      %c0_12 = arith.constant 0 : index
      %26 = vector.load %arg5[%c0_11, %c0_12] : memref<1x1xf32, #tpu.memory_space<vmem>>, vector<1x1xf32>
      tpu.vector_store %arg5[%c0_11, %c0_12], %25 {strides = array<i32>} : memref<1x1xf32, #tpu.memory_space<vmem>>, vector<1x1xf32>,
    } else {
    }
    %c0 = arith.constant 0 : index
    %c0_1 = arith.constant 0 : index
    %3 = vector.load %arg4[%c0, %c0_1] : memref<8x256xf32, #tpu.memory_space<vmem>>, vector<8x256xf32>
    %c0_2 = arith.constant 0 : index
    %c0_3 = arith.constant 0 : index
    %4 = vector.load %arg5[%c0_2, %c0_3] : memref<1x1xf32, #tpu.memory_space<vmem>>, vector<1x1xf32>
    %c240_i32 = arith.constant 240 : i32
    %5 = tpu.dynamic_rotate %3 by %c240_i32 dim 1 : vector<8x256xf32>, i32 -> vector<8x256xf32>
    %6 = arith.subf %5, %3 : vector<8x256xf32>
    %7 = arith.mulf %6, %6 : vector<8x256xf32>
    %c0_4 = arith.constant 0 : index
    %c0_5 = arith.constant 0 : index
    %8 = vector.load %arg2[%c0_4, %c0_5] : memref<1x256xf32, #tpu.memory_space<vmem>>, vector<1x256xf32>
    %9 = vector.broadcast %8 : vector<1x256xf32> to vector<8x256xf32>
    %10 = arith.mulf %7, %9 : vector<8x256xf32>
    %c255_i32 = arith.constant 255 : i32
    %11 = tpu.dynamic_rotate %3 by %c255_i32 dim 1 : vector<8x256xf32>, i32 -> vector<8x256xf32>
    %12 = arith.subf %11, %3 : vector<8x256xf32>
    %13 = arith.mulf %12, %12 : vector<8x256xf32>
    %c0_6 = arith.constant 0 : index
    %c0_7 = arith.constant 0 : index
    %14 = vector.load %arg3[%c0_6, %c0_7] : memref<1x256xf32, #tpu.memory_space<vmem>>, vector<1x256xf32>
    %15 = vector.broadcast %14 : vector<1x256xf32> to vector<8x256xf32>
    %16 = arith.mulf %13, %15 : vector<8x256xf32>
    %17 = arith.addf %10, %16 : vector<8x256xf32>
    %18 = vector.shape_cast %17 : vector<8x256xf32> to vector<1x8x256xf32>
    %cst = arith.constant dense<0.000000e+00> : vector<1xf32>
    %19 = vector.multi_reduction <add>, %18, %cst [1, 2] : vector<1x8x256xf32> to vector<1xf32>
    %20 = vector.shape_cast %19 : vector<1xf32> to vector<1x1x1xf32>
    %21 = vector.extract %20[0, 0, 0] : f32 from vector<1x1x1xf32>
    %22 = vector.broadcast %21 : f32 to vector<1x1xf32>
    %23 = arith.addf %4, %22 : vector<1x1xf32>
    %c0_8 = arith.constant 0 : index
    %c0_9 = arith.constant 0 : index
    %24 = vector.load %arg5[%c0_8, %c0_9] : memref<1x1xf32, #tpu.memory_space<vmem>>, vector<1x1xf32>
    tpu.vector_store %arg5[%c0_8, %c0_9], %23 {strides = array<i32>} : memref<1x1xf32, #tpu.memory_space<vmem>>, vector<1x1xf32>,
    return
  }
  func.func @transform_0(%arg0: i32, %arg1: i32) -> (i32, i32) {
    %c0_i32 = arith.constant 0 : i32
    %c0_i32_0 = arith.constant 0 : i32
    %c0_i32_1 = arith.constant 0 : i32
    return %c0_i32, %c0_i32_0 : i32, i32
  }
  func.func @transform_1(%arg0: i32, %arg1: i32) -> (i32, i32) {
    %c0_i32 = arith.constant 0 : i32
    %c0_i32_0 = arith.constant 0 : i32
    %c0_i32_1 = arith.constant 0 : i32
    return %c0_i32, %c0_i32_0 : i32, i32
  }
  func.func @transform_2(%arg0: i32, %arg1: i32) -> (i32, i32) {
    %c1_i32 = arith.constant 1 : i32
    %0 = arith.muli %arg0, %c1_i32 : i32
    %1 = arith.addi %0, %arg1 : i32
    %c0_i32 = arith.constant 0 : i32
    %c0_i32_0 = arith.constant 0 : i32
    return %1, %c0_i32 : i32, i32
  }
  func.func @transform_3(%arg0: i32, %arg1: i32) -> (i32, i32) {
    %c0_i32 = arith.constant 0 : i32
    %c0_i32_0 = arith.constant 0 : i32
    return %arg0, %c0_i32 : i32, i32
  }
}

</mosaic_0001>

<llo_original>
// kernel: tpu_custom_call.1
$region0: #{tpu_custom_call.1}
  #allocation0 [shape = 'u32[]', space=smem, size = 0x4, offset = 0x4, fixed_abs, tag = 'smem constant byte address 0x4 - core index']
  #allocation1 [shape = 'u32[72,128]{1,0:T(1,128)}', space=vmem, size = 0x9000, scoped, tag = 'internal scratch']
  %s0 = inlined_call_operand.hbm [shape: f32[1,256], index: 0, kind: input, shape index: {}]
  %s1 = inlined_call_operand.hbm [shape: f32[1,256], index: 1, kind: input, shape index: {}]
  %s2 = inlined_call_operand.hbm [shape: f32[8,256], index: 2, kind: input, shape index: {}]
  %s3 = inlined_call_operand.hbm [shape: f32[1,1], index: 3, kind: output, shape index: {}]
  %s4 = sld [smem:[#allocation0]]
  $region38: #{tpu_custom_call.1} parent=0
    _
  %s6 = ssub.s32 1, %s4
  %s7 = scalar_select 0, %s6, %s4
  $region1: #{tpu_custom_call.1} parent=0
    #allocation2 [shape = 'u8[1024]{0}', space=vmem, size = 0x400, scoped, tag = 'input window, operand 0, single buffered']
    #allocation3 [shape = 's32[1]{0}', space=sflag, size = 0x4, scoped, tag = 'scoped memory for tpu_custom_call.1']
    #allocation4 [shape = 's32[1]{0}', space=sflag, size = 0x4, scoped, tag = 'scoped memory for tpu_custom_call.1']
    #allocation5 [shape = 'u8[1024]{0}', space=vmem, size = 0x400, scoped, tag = 'input window, operand 1, single buffered']
    #allocation6 [shape = 's32[1]{0}', space=sflag, size = 0x4, scoped, tag = 'scoped memory for tpu_custom_call.1']
    #allocation7 [shape = 'u8[8192]{0}', space=vmem, size = 0x2000, scoped, tag = 'input window, operand 2, single buffered']
    #allocation8 [shape = 'u8[512]{0}', space=vmem, size = 0x400, scoped, tag = 'output window, operand 0, single buffered']
    %8 = vsyncpa [#allocation3], 0
    %9 = vsyncpa [#allocation6], 0
    %10 = vsyncpa [#allocation4], 0
    // Predicated region
    $region2: #{tpu_custom_call.1} parent=1 // pred_check
      _
    $region3: #{tpu_custom_call.1} parent=1 // pred_check_branch
      %12 = sbr.rel (0) target = $region5
    $region4: #{tpu_custom_call.1} parent=1 // pred_region
      %14 = vsyncadd [#allocation3], 0
      %s16 = sshll.u32 %s0, 4
      %s17 = int_to_ptr.hbm [resolvable:$true] %s16
      %s18 = sshll.u32 [#allocation2], 4
      %s19 = int_to_ptr.vmem [resolvable:$true] %s18
      %21 = dma.hbm_to_vmem [thread:$0]  %s17, 32, %s19, [#allocation3]
    $region5: #{tpu_custom_call.1} parent=1 // pred_fallthru
      _
    // Predicated region
    $region6: #{tpu_custom_call.1} parent=1 // pred_check
      _
    $region7: #{tpu_custom_call.1} parent=1 // pred_check_branch
      %23 = sbr.rel (0) target = $region9
    $region8: #{tpu_custom_call.1} parent=1 // pred_region
      %25 = vsyncadd [#allocation6], 0
      %s27 = sshll.u32 %s1, 4
      %s28 = int_to_ptr.hbm [resolvable:$true] %s27
      %s29 = sshll.u32 [#allocation5], 4
      %s30 = int_to_ptr.vmem [resolvable:$true] %s29
      %32 = dma.hbm_to_vmem [thread:$0]  %s28, 32, %s30, [#allocation6]
    $region9: #{tpu_custom_call.1} parent=1 // pred_fallthru
      _
    // Predicated region
    $region10: #{tpu_custom_call.1} parent=1 // pred_check
      _
    $region11: #{tpu_custom_call.1} parent=1 // pred_check_branch
      %34 = sbr.rel (0) target = $region13
    $region12: #{tpu_custom_call.1} parent=1 // pred_region
      %s35 = sadd.s32 0, 0
      %37 = vsyncadd [#allocation6], 0
      %s38 = smul.addr %s35, 2
      %s39 = smul.addr %s38, 8
      %s40 = scalar_lea.hbm %s2, %s39
      %s42 = sshll.u32 %s40, 4
      %s43 = int_to_ptr.hbm [resolvable:$true] %s42
      %s44 = sshll.u32 [#allocation7], 4
      %s45 = int_to_ptr.vmem [resolvable:$true] %s44
      %47 = dma.hbm_to_vmem [thread:$0]  %s43, 256, %s45, [#allocation6]
    $region13: #{tpu_custom_call.1} parent=1 // pred_fallthru
      _
    // Predicated region
    $region14: #{tpu_custom_call.1} parent=1 // pred_check
      _
    $region15: #{tpu_custom_call.1} parent=1 // pred_check_branch
      %49 = sbr.rel (0) target = $region17
    $region16: #{tpu_custom_call.1} parent=1 // pred_region
      %51 = dma.done [#allocation3], 32
    $region17: #{tpu_custom_call.1} parent=1 // pred_fallthru
      _
    // Predicated region
    $region18: #{tpu_custom_call.1} parent=1 // pred_check
      _
    $region19: #{tpu_custom_call.1} parent=1 // pred_check_branch
      %53 = sbr.rel (0) target = $region21
    $region20: #{tpu_custom_call.1} parent=1 // pred_region
      %55 = dma.done [#allocation6], 32
    $region21: #{tpu_custom_call.1} parent=1 // pred_fallthru
      _
    // Predicated region
    $region22: #{tpu_custom_call.1} parent=1 // pred_check
      _
    $region23: #{tpu_custom_call.1} parent=1 // pred_check_branch
      %57 = sbr.rel (0) target = $region25
    $region24: #{tpu_custom_call.1} parent=1 // pred_region
      %59 = dma.done [#allocation6], 256
    $region25: #{tpu_custom_call.1} parent=1 // pred_fallthru
      _
    %s60 = sadd.s32 0, 0
    %p61 = scmp.eq.s32.totalorder 0, 0
    // Predicated region
    $region26: #{tpu_custom_call.1} parent=1 // pred_check
      %p62 = pneg %p61
    $region27: #{tpu_custom_call.1} parent=1 // pred_check_branch
      %64 = sbr.rel (%p62) target = $region29
    $region28: #{tpu_custom_call.1} parent=1 // pred_region
      %vm65 = vcmask 0
      %66 = vst.msk [vmem:[#allocation8] sm:$0x1] %vm65, 0.0
    $region29: #{tpu_custom_call.1} parent=1 // pred_fallthru
      _
    %v67 = vld [vmem:[#allocation7] sm:$0xff]
    %v68 = vld [vmem:[#allocation7 + $0x8] sm:$0xff]
    %v69 = vld [vmem:[#allocation8] sm:$0x1]
    %70 = vrot.lane.b32.xlu0 %v67, 112
    %v71 = vpop.permute.xlu0 %70
    %72 = vrot.lane.b32.xlu0 %v68, 112
    %v73 = vpop.permute.xlu0 %72
    %v74 = vlaneseq
    %v75 = vand.u32 %v74, 127
    %vm76 = vcmp.lt.s32.totalorder %v75, 112
    %v77 = vsel %vm76, %v71, %v73
    %v78 = vsel %vm76, %v73, %v71
    %v79 = vsub.f32 %v77, %v67
    %v80 = vsub.f32 %v78, %v68
    %v81 = vmul.f32 %v79, %v79
    %v82 = vmul.f32 %v80, %v80
    %v83 = vld [vmem:[#allocation2] sm:$0x3]
    %v85 = vperm.slane %v83, 0
    %v86 = vperm.slane %v83, 1
    %v89 = vmul.f32 %v81, %v85
    %v90 = vmul.f32 %v82, %v86
    %91 = vrot.lane.b32.xlu0 %v67, 127
    %v92 = vpop.permute.xlu0 %91
    %93 = vrot.lane.b32.xlu0 %v68, 127
    %v94 = vpop.permute.xlu0 %93
    %vm95 = vcmp.lt.s32.totalorder %v75, 127
    %v96 = vsel %vm95, %v92, %v94
    %v97 = vsel %vm95, %v94, %v92
    %v98 = vsub.f32 %v96, %v67
    %v99 = vsub.f32 %v97, %v68
    %v100 = vmul.f32 %v98, %v98
    %v101 = vmul.f32 %v99, %v99
    %v102 = vld [vmem:[#allocation5] sm:$0x3]
    %v104 = vperm.slane %v102, 0
    %v105 = vperm.slane %v102, 1
    %v108 = vmul.f32 %v100, %v104
    %v109 = vmul.f32 %v101, %v105
    %v110 = vadd.f32 %v89, %v108
    %v111 = vadd.f32 %v90, %v109
    %v112 = vadd.f32 %v110, %v111
    %113 = vadd.xlane.f32.xlu0 %v112
    %v114 = vpop.xlane.xlu0 %113
    %v115 = vrot.slane %v114, 4
    %v116 = vadd.f32 %v114, %v115
    %v117 = vrot.slane %v116, 2
    %v118 = vadd.f32 %v116, %v117
    %v119 = vrot.slane %v118, 1
    %v120 = vadd.f32 %v118, %v119
    %s121 = vtos %v120
    %v122 = vstv %s121
    %v123 = vadd.f32 %v69, %v122
    %vm124 = vcmask 0
    %125 = vst.msk [vmem:[#allocation8] sm:$0x1] %vm124, %v123
    // Predicated region
    $region30: #{tpu_custom_call.1} parent=1 // pred_check
      _
    $region31: #{tpu_custom_call.1} parent=1 // pred_check_branch
      %127 = sbr.rel (0) target = $region33
    $region32: #{tpu_custom_call.1} parent=1 // pred_region
      %129 = vsyncadd [#allocation4], 0
      %s131 = sshll.u32 [#allocation8], 4
      %s132 = int_to_ptr.vmem [resolvable:$true] %s131
      %s133 = sshll.u32 %s3, 4
      %s134 = int_to_ptr.hbm [resolvable:$true] %s133
      %136 = dma.vmem_to_hbm [thread:$0]  %s132, 16, %s134, [#allocation4]
    $region33: #{tpu_custom_call.1} parent=1 // pred_fallthru
      _
    // Predicated region
    $region34: #{tpu_custom_call.1} parent=1 // pred_check
      _
    $region35: #{tpu_custom_call.1} parent=1 // pred_check_branch
      %138 = sbr.rel (0) target = $region37
    $region36: #{tpu_custom_call.1} parent=1 // pred_region
      %140 = dma.done [#allocation4], 16
    $region37: #{tpu_custom_call.1} parent=1 // pred_fallthru
      _
    %141 = vsyncpa [#allocation3], 1
    %142 = vsyncpa [#allocation6], 1
    %143 = vsyncpa [#allocation4], 1

</llo_original>
